<compile_context>
chip_gen: v6e
topology: v6e:2x2x1
jax: 0.10.0
libtpu: 0.0.40
codegen_flags: <defaults>
</compile_context>

<pallas_src>
import functools

import jax
import jax.numpy as jnp
from jax.experimental import pallas as pl
from jax.experimental.pallas import tpu as pltpu


# Parameter packing (flat f32[21], PyTorch (out, in) convention):
#   p[3*j + k]  = fc1.weight[j, k]   j in 0..3, k in 0..2
#   p[12 + j]   = fc1.bias[j]
#   p[16 + j]   = fc2.weight[0, j]
#   p[20]       = fc2.bias[0]
def mlp_kernel(p_ref, x_ref, o_ref):
    # x_ref block: (3, R, 128) f32.  Each feature plane is a dense (R, 128) tile.
    x0 = x_ref[0]
    x1 = x_ref[1]
    x2 = x_ref[2]

    # fc1 + ReLU + fc2, fully unrolled: 4 hidden units, 12 + 4 FMAs, all scalar
    # broadcasts of SMEM-resident params against dense vregs.
    acc = None
    for j in range(4):
        h = (p_ref[3 * j + 0] * x0
             + p_ref[3 * j + 1] * x1
             + p_ref[3 * j + 2] * x2
             + p_ref[12 + j])
        h = jnp.maximum(h, 0.0)                      # ReLU
        term = p_ref[16 + j] * h
        acc = term if acc is None else acc + term
    z = acc + p_ref[20]

    # sigmoid(z) = 0.5 * tanh(0.5*z) + 0.5  -> one EUP transcendental, no approx recip.
    o_ref[...] = (0.5 * jnp.tanh(0.5 * z) + 0.5).astype(o_ref.dtype)


@jax.jit
def neural_net_forward(x, w1, b1, w2, b2):
    """x: (B, 3) f32.  w1: (4,3), b1: (4,), w2: (1,4), b2: (1,)  (PyTorch layout)."""
    B = x.shape[0]

    # --- block sizing -------------------------------------------------------
    # rows of 128 batch lanes; R rows per grid step (multiple of 8 sublanes).
    rows = pl.cdiv(B, 128)
    R_MAX = 2048                       # 3*R*128*4 B in + R*128*4 B out, x2 buffers
                                       # ~= 8 MiB total: safe on v5e/v6e/v7x scoped VMEM
    R = min(R_MAX, pl.cdiv(rows, 2))   # aim for >= 2 grid steps (v7x megacore)
    R = max(8, pl.cdiv(R, 8) * 8)      # sublane multiple
    rows_p = pl.cdiv(rows, R) * R
    Bp = rows_p * 128

    # --- layout: batch on (sublane, lane), features as leading planes --------
    # TODO(synk): if the caller can supply x already as (3, B) feature planes, this
    # pad+transpose pass (an extra ~24 B/elem of HBM traffic) disappears entirely.
    xp = jnp.zeros((Bp, 3), jnp.float32).at[:B, :].set(x.astype(jnp.float32))
    x_t = xp.T.reshape(3, rows_p, 128)

    # Pack all 21 parameters into one flat SMEM array.
    params = jnp.concatenate([
        w1.reshape(-1), b1.reshape(-1), w2.reshape(-1), b2.reshape(-1)
    ]).astype(jnp.float32)                            # (21,)

    grid = (rows_p // R,)
    out_t = pl.pallas_call(
        mlp_kernel,
        out_shape=jax.ShapeDtypeStruct((rows_p, 128), jnp.float32),
        grid_spec=pltpu.PrefetchScalarGridSpec(
            num_scalar_prefetch=0,
            grid=grid,
            in_specs=[
                pl.BlockSpec(memory_space=pltpu.MemorySpace.SMEM),    # params
                pl.BlockSpec((3, R, 128), lambda i: (0, i, 0)),       # x block
            ],
            out_specs=pl.BlockSpec((R, 128), lambda i: (i, 0)),
        ),
        compiler_params=pltpu.CompilerParams(
            dimension_semantics=("parallel",),        # shard batch across TCs (v7x)
        ),
        cost_estimate=pl.CostEstimate(
            flops=32 * Bp,                # 2*3*4 + 2*4 per element
            transcendentals=Bp,           # one tanh per element
            bytes_accessed=16 * Bp,       # 12 B in (3 x f32) + 4 B out
        ),
    )(params, x_t)

    # Back to the PyTorch (B, 1) shape, dropping padding.
    return out_t.reshape(Bp)[:B].reshape(B, 1)


def init_params(key):
    """Mirrors the PyTorch module (weights in (out, in) layout).

    fc1.weight: kaiming_normal_(fan_in=3, relu) -> std = sqrt(2/3)
    fc2.weight: kaiming_normal_(fan_in=4, relu) -> std = sqrt(2/4)
    biases: PyTorch Linear default U(-1/sqrt(fan_in), 1/sqrt(fan_in))
    """
    k1, k2, k3, k4 = jax.random.split(key, 4)
    w1 = jax.random.normal(k1, (4, 3), jnp.float32) * jnp.sqrt(2.0 / 3.0)
    b1 = jax.random.uniform(k3, (4,), jnp.float32,
                            minval=-1.0 / jnp.sqrt(3.0), maxval=1.0 / jnp.sqrt(3.0))
    w2 = jax.random.normal(k2, (1, 4), jnp.float32) * jnp.sqrt(2.0 / 4.0)
    b2 = jax.random.uniform(k4, (1,), jnp.float32,
                            minval=-1.0 / jnp.sqrt(4.0), maxval=1.0 / jnp.sqrt(4.0))
    return w1, b1, w2, b2


def reference_forward(x, w1, b1, w2, b2):
    h = jnp.maximum(x @ w1.T + b1, 0.0)
    return jax.nn.sigmoid(h @ w2.T + b2)


if __name__ == "__main__":
    key = jax.random.PRNGKey(0)
    kx, kp = jax.random.split(key)

    B = 300  # small, non-multiple of 128 to exercise the pad/slice path
    x = jax.random.normal(kx, (B, 3), jnp.float32)
    w1, b1, w2, b2 = init_params(kp)

    out = neural_net_forward(x, w1, b1, w2, b2)
    out = jax.block_until_ready(out)

    ref = reference_forward(x, w1, b1, w2, b2)
    assert out.shape == (B, 1)
    assert jnp.allclose(out, ref, atol=1e-4, rtol=1e-4), "mismatch vs reference"

    print("KERNEL_OK")
</pallas_src>

<mosaic_0001>
module attributes {stable_mosaic.version = 11 : i64} {
  func.func @mlp_kernel(%arg0: i32, %arg1: memref<21xf32, #tpu.memory_space<smem>>, %arg2: memref<3x8x128xf32, #tpu.memory_space<vmem>>, %arg3: memref<8x128xf32, #tpu.memory_space<vmem>>) attributes {dimension_semantics = [#tpu.dimension_semantics<parallel>], iteration_bounds = array<i64: 1>, scalar_prefetch = 0 : i64, scratch_operands = 0 : i64, tpu.core_type = #tpu.core_type<tc>, window_params = [{transform_indices = @transform_0, window_bounds = array<i64: 21>}, {transform_indices = @transform_1, window_bounds = array<i64: 3, 8, 128>}, {transform_indices = @transform_2, window_bounds = array<i64: 8, 128>}]} {
    %c0 = arith.constant 0 : index
    %c0_0 = arith.constant 0 : index
    %c0_1 = arith.constant 0 : index
    %0 = vector.load %arg2[%c0, %c0_0, %c0_1] : memref<3x8x128xf32, #tpu.memory_space<vmem>>, vector<1x8x128xf32>
    %1 = vector.shape_cast %0 : vector<1x8x128xf32> to vector<8x128xf32>
    %c1 = arith.constant 1 : index
    %c0_2 = arith.constant 0 : index
    %c0_3 = arith.constant 0 : index
    %2 = vector.load %arg2[%c1, %c0_2, %c0_3] : memref<3x8x128xf32, #tpu.memory_space<vmem>>, vector<1x8x128xf32>
    %3 = vector.shape_cast %2 : vector<1x8x128xf32> to vector<8x128xf32>
    %c2 = arith.constant 2 : index
    %c0_4 = arith.constant 0 : index
    %c0_5 = arith.constant 0 : index
    %4 = vector.load %arg2[%c2, %c0_4, %c0_5] : memref<3x8x128xf32, #tpu.memory_space<vmem>>, vector<1x8x128xf32>
    %5 = vector.shape_cast %4 : vector<1x8x128xf32> to vector<8x128xf32>
    %c0_6 = arith.constant 0 : index
    %6 = memref.load %arg1[%c0_6] : memref<21xf32, #tpu.memory_space<smem>>
    %7 = vector.broadcast %6 : f32 to vector<8x128xf32>
    %8 = arith.mulf %7, %1 : vector<8x128xf32>
    %c1_7 = arith.constant 1 : index
    %9 = memref.load %arg1[%c1_7] : memref<21xf32, #tpu.memory_space<smem>>
    %10 = vector.broadcast %9 : f32 to vector<8x128xf32>
    %11 = arith.mulf %10, %3 : vector<8x128xf32>
    %12 = arith.addf %8, %11 : vector<8x128xf32>
    %c2_8 = arith.constant 2 : index
    %13 = memref.load %arg1[%c2_8] : memref<21xf32, #tpu.memory_space<smem>>
    %14 = vector.broadcast %13 : f32 to vector<8x128xf32>
    %15 = arith.mulf %14, %5 : vector<8x128xf32>
    %16 = arith.addf %12, %15 : vector<8x128xf32>
    %c12 = arith.constant 12 : index
    %17 = memref.load %arg1[%c12] : memref<21xf32, #tpu.memory_space<smem>>
    %18 = vector.broadcast %17 : f32 to vector<8x128xf32>
    %19 = arith.addf %16, %18 : vector<8x128xf32>
    %cst = arith.constant 0.000000e+00 : f32
    %20 = vector.broadcast %cst : f32 to vector<8x128xf32>
    %21 = arith.maximumf %19, %20 : vector<8x128xf32>
    %c16 = arith.constant 16 : index
    %22 = memref.load %arg1[%c16] : memref<21xf32, #tpu.memory_space<smem>>
    %23 = vector.broadcast %22 : f32 to vector<8x128xf32>
    %24 = arith.mulf %23, %21 : vector<8x128xf32>
    %c3 = arith.constant 3 : index
    %25 = memref.load %arg1[%c3] : memref<21xf32, #tpu.memory_space<smem>>
    %26 = vector.broadcast %25 : f32 to vector<8x128xf32>
    %27 = arith.mulf %26, %1 : vector<8x128xf32>
    %c4 = arith.constant 4 : index
    %28 = memref.load %arg1[%c4] : memref<21xf32, #tpu.memory_space<smem>>
    %29 = vector.broadcast %28 : f32 to vector<8x128xf32>
    %30 = arith.mulf %29, %3 : vector<8x128xf32>
    %31 = arith.addf %27, %30 : vector<8x128xf32>
    %c5 = arith.constant 5 : index
    %32 = memref.load %arg1[%c5] : memref<21xf32, #tpu.memory_space<smem>>
    %33 = vector.broadcast %32 : f32 to vector<8x128xf32>
    %34 = arith.mulf %33, %5 : vector<8x128xf32>
    %35 = arith.addf %31, %34 : vector<8x128xf32>
    %c13 = arith.constant 13 : index
    %36 = memref.load %arg1[%c13] : memref<21xf32, #tpu.memory_space<smem>>
    %37 = vector.broadcast %36 : f32 to vector<8x128xf32>
    %38 = arith.addf %35, %37 : vector<8x128xf32>
    %cst_9 = arith.constant 0.000000e+00 : f32
    %39 = vector.broadcast %cst_9 : f32 to vector<8x128xf32>
    %40 = arith.maximumf %38, %39 : vector<8x128xf32>
    %c17 = arith.constant 17 : index
    %41 = memref.load %arg1[%c17] : memref<21xf32, #tpu.memory_space<smem>>
    %42 = vector.broadcast %41 : f32 to vector<8x128xf32>
    %43 = arith.mulf %42, %40 : vector<8x128xf32>
    %44 = arith.addf %24, %43 : vector<8x128xf32>
    %c6 = arith.constant 6 : index
    %45 = memref.load %arg1[%c6] : memref<21xf32, #tpu.memory_space<smem>>
    %46 = vector.broadcast %45 : f32 to vector<8x128xf32>
    %47 = arith.mulf %46, %1 : vector<8x128xf32>
    %c7 = arith.constant 7 : index
    %48 = memref.load %arg1[%c7] : memref<21xf32, #tpu.memory_space<smem>>
    %49 = vector.broadcast %48 : f32 to vector<8x128xf32>
    %50 = arith.mulf %49, %3 : vector<8x128xf32>
    %51 = arith.addf %47, %50 : vector<8x128xf32>
    %c8 = arith.constant 8 : index
    %52 = memref.load %arg1[%c8] : memref<21xf32, #tpu.memory_space<smem>>
    %53 = vector.broadcast %52 : f32 to vector<8x128xf32>
    %54 = arith.mulf %53, %5 : vector<8x128xf32>
    %55 = arith.addf %51, %54 : vector<8x128xf32>
    %c14 = arith.constant 14 : index
    %56 = memref.load %arg1[%c14] : memref<21xf32, #tpu.memory_space<smem>>
    %57 = vector.broadcast %56 : f32 to vector<8x128xf32>
    %58 = arith.addf %55, %57 : vector<8x128xf32>
    %cst_10 = arith.constant 0.000000e+00 : f32
    %59 = vector.broadcast %cst_10 : f32 to vector<8x128xf32>
    %60 = arith.maximumf %58, %59 : vector<8x128xf32>
    %c18 = arith.constant 18 : index
    %61 = memref.load %arg1[%c18] : memref<21xf32, #tpu.memory_space<smem>>
    %62 = vector.broadcast %61 : f32 to vector<8x128xf32>
    %63 = arith.mulf %62, %60 : vector<8x128xf32>
    %64 = arith.addf %44, %63 : vector<8x128xf32>
    %c9 = arith.constant 9 : index
    %65 = memref.load %arg1[%c9] : memref<21xf32, #tpu.memory_space<smem>>
    %66 = vector.broadcast %65 : f32 to vector<8x128xf32>
    %67 = arith.mulf %66, %1 : vector<8x128xf32>
    %c10 = arith.constant 10 : index
    %68 = memref.load %arg1[%c10] : memref<21xf32, #tpu.memory_space<smem>>
    %69 = vector.broadcast %68 : f32 to vector<8x128xf32>
    %70 = arith.mulf %69, %3 : vector<8x128xf32>
    %71 = arith.addf %67, %70 : vector<8x128xf32>
    %c11 = arith.constant 11 : index
    %72 = memref.load %arg1[%c11] : memref<21xf32, #tpu.memory_space<smem>>
    %73 = vector.broadcast %72 : f32 to vector<8x128xf32>
    %74 = arith.mulf %73, %5 : vector<8x128xf32>
    %75 = arith.addf %71, %74 : vector<8x128xf32>
    %c15 = arith.constant 15 : index
    %76 = memref.load %arg1[%c15] : memref<21xf32, #tpu.memory_space<smem>>
    %77 = vector.broadcast %76 : f32 to vector<8x128xf32>
    %78 = arith.addf %75, %77 : vector<8x128xf32>
    %cst_11 = arith.constant 0.000000e+00 : f32
    %79 = vector.broadcast %cst_11 : f32 to vector<8x128xf32>
    %80 = arith.maximumf %78, %79 : vector<8x128xf32>
    %c19 = arith.constant 19 : index
    %81 = memref.load %arg1[%c19] : memref<21xf32, #tpu.memory_space<smem>>
    %82 = vector.broadcast %81 : f32 to vector<8x128xf32>
    %83 = arith.mulf %82, %80 : vector<8x128xf32>
    %84 = arith.addf %64, %83 : vector<8x128xf32>
    %c20 = arith.constant 20 : index
    %85 = memref.load %arg1[%c20] : memref<21xf32, #tpu.memory_space<smem>>
    %86 = vector.broadcast %85 : f32 to vector<8x128xf32>
    %87 = arith.addf %84, %86 : vector<8x128xf32>
    %cst_12 = arith.constant 5.000000e-01 : f32
    %88 = vector.broadcast %cst_12 : f32 to vector<8x128xf32>
    %89 = arith.mulf %88, %87 : vector<8x128xf32>
    %90 = math.tanh %89 : vector<8x128xf32>
    %cst_13 = arith.constant 5.000000e-01 : f32
    %91 = vector.broadcast %cst_13 : f32 to vector<8x128xf32>
    %92 = arith.mulf %91, %90 : vector<8x128xf32>
    %cst_14 = arith.constant 5.000000e-01 : f32
    %93 = vector.broadcast %cst_14 : f32 to vector<8x128xf32>
    %94 = arith.addf %92, %93 : vector<8x128xf32>
    %c0_15 = arith.constant 0 : index
    %c0_16 = arith.constant 0 : index
    %95 = vector.load %arg3[%c0_15, %c0_16] : memref<8x128xf32, #tpu.memory_space<vmem>>, vector<8x128xf32>
    tpu.vector_store %arg3[%c0_15, %c0_16], %94 {strides = array<i32>} : memref<8x128xf32, #tpu.memory_space<vmem>>, vector<8x128xf32>,
    return
  }
  func.func @transform_0(%arg0: i32) -> i32 {
    %c0_i32 = arith.constant 0 : i32
    %c0_i32_0 = arith.constant 0 : i32
    return %c0_i32 : i32
  }
  func.func @transform_1(%arg0: i32) -> (i32, i32, i32) {
    %c0_i32 = arith.constant 0 : i32
    %c0_i32_0 = arith.constant 0 : i32
    %c0_i32_1 = arith.constant 0 : i32
    return %c0_i32, %arg0, %c0_i32_0 : i32, i32, i32
  }
  func.func @transform_2(%arg0: i32) -> (i32, i32) {
    %c0_i32 = arith.constant 0 : i32
    %c0_i32_0 = arith.constant 0 : i32
    return %arg0, %c0_i32 : i32, i32
  }
}

</mosaic_0001>

<llo_original>
// kernel: neural_net_forward.1
$region0: #{neural_net_forward.1}
  #allocation0 [shape = 'u32[]', space=smem, size = 0x4, offset = 0x4, fixed_abs, tag = 'smem constant byte address 0x4 - core index']
  #allocation1 [shape = 'u32[144,128]{1,0:T(1,128)}', space=vmem, size = 0x12000, scoped, tag = 'internal scratch']
  %s0 = inlined_call_operand.vmem [shape: f32[21], index: 0, kind: input, shape index: {}]
  %s1 = inlined_call_operand.vmem [shape: f32[3,8,128], index: 1, kind: input, shape index: {}]
  %s2 = inlined_call_operand.vmem [shape: f32[8,128], index: 2, kind: output, shape index: {}]
  %s3 = sld [smem:[#allocation0]]
  $region22: #{neural_net_forward.1} parent=0
    _
  %s5 = ssub.s32 1, %s3
  %s6 = scalar_select 0, %s5, %s3
  $region1: #{neural_net_forward.1} parent=0
    #allocation2 [shape = 'u8[512]{0}', space=smem, size = 0x200, scoped, tag = 'input window, operand 0, single buffered']
    #allocation3 [shape = 's32[1]{0}', space=sflag, size = 0x4, scoped, tag = 'scoped memory for neural_net_forward.1']
    %7 = vsyncpa [#allocation3], 0
    // Predicated region
    $region2: #{neural_net_forward.1} parent=1 // pred_check
      _
    $region3: #{neural_net_forward.1} parent=1 // pred_check_branch
      %9 = sbr.rel (0) target = $region5
    $region4: #{neural_net_forward.1} parent=1 // pred_region
      %s11 = ssub.s32 16, 16
      %12 = vsyncadd [#allocation3], %s11
      %s14 = sshll.u32 %s0, 4
      %s15 = int_to_ptr.vmem [resolvable:$true] %s14
      %17 = dma.vmem_to_smem %s15, 16, [#allocation2], [#allocation3]
    $region5: #{neural_net_forward.1} parent=1 // pred_fallthru
      _
    // Predicated region
    $region6: #{neural_net_forward.1} parent=1 // pred_check
      _
    $region7: #{neural_net_forward.1} parent=1 // pred_check_branch
      %19 = sbr.rel (0) target = $region9
    $region8: #{neural_net_forward.1} parent=1 // pred_region
      _
    $region9: #{neural_net_forward.1} parent=1 // pred_fallthru
      _
    // Predicated region
    $region10: #{neural_net_forward.1} parent=1 // pred_check
      _
    $region11: #{neural_net_forward.1} parent=1 // pred_check_branch
      %21 = sbr.rel (0) target = $region13
    $region12: #{neural_net_forward.1} parent=1 // pred_region
      %22 = dma.done [#allocation3], 16
    $region13: #{neural_net_forward.1} parent=1 // pred_fallthru
      _
    %23 = sfence
    %v24 = vld [vmem:[%s1] sm:$0xff]
    %s25 = scalar_lea.vmem %s1, 8
    %v26 = vld [vmem:[%s25] sm:$0xff]
    %s27 = scalar_lea.vmem %s1, 16
    %v28 = vld [vmem:[%s27] sm:$0xff]
    %s29 = sld [smem:[#allocation2]]
    %v30 = vstv %s29
    %v31 = vmul.f32 %v30, %v24
    %s32 = sld [smem:[#allocation2 + $0x1]]
    %v33 = vstv %s32
    %v34 = vmul.f32 %v33, %v26
    %v35 = vadd.f32 %v31, %v34
    %s36 = sld [smem:[#allocation2 + $0x2]]
    %v37 = vstv %s36
    %v38 = vmul.f32 %v37, %v28
    %v39 = vadd.f32 %v35, %v38
    %s40 = sld [smem:[#allocation2 + $0xc]]
    %v41 = vstv %s40
    %v42 = vadd.f32 %v39, %v41
    %v43 = vmax.f32 %v42, 0.0
    %s44 = sld [smem:[#allocation2 + $0x10]]
    %v45 = vstv %s44
    %v46 = vmul.f32 %v45, %v43
    %s47 = sld [smem:[#allocation2 + $0x3]]
    %v48 = vstv %s47
    %v49 = vmul.f32 %v48, %v24
    %s50 = sld [smem:[#allocation2 + $0x4]]
    %v51 = vstv %s50
    %v52 = vmul.f32 %v51, %v26
    %v53 = vadd.f32 %v49, %v52
    %s54 = sld [smem:[#allocation2 + $0x5]]
    %v55 = vstv %s54
    %v56 = vmul.f32 %v55, %v28
    %v57 = vadd.f32 %v53, %v56
    %s58 = sld [smem:[#allocation2 + $0xd]]
    %v59 = vstv %s58
    %v60 = vadd.f32 %v57, %v59
    %v61 = vmax.f32 %v60, 0.0
    %s62 = sld [smem:[#allocation2 + $0x11]]
    %v63 = vstv %s62
    %v64 = vmul.f32 %v63, %v61
    %v65 = vadd.f32 %v46, %v64
    %s66 = sld [smem:[#allocation2 + $0x6]]
    %v67 = vstv %s66
    %v68 = vmul.f32 %v67, %v24
    %s69 = sld [smem:[#allocation2 + $0x7]]
    %v70 = vstv %s69
    %v71 = vmul.f32 %v70, %v26
    %v72 = vadd.f32 %v68, %v71
    %s73 = sld [smem:[#allocation2 + $0x8]]
    %v74 = vstv %s73
    %v75 = vmul.f32 %v74, %v28
    %v76 = vadd.f32 %v72, %v75
    %s77 = sld [smem:[#allocation2 + $0xe]]
    %v78 = vstv %s77
    %v79 = vadd.f32 %v76, %v78
    %v80 = vmax.f32 %v79, 0.0
    %s81 = sld [smem:[#allocation2 + $0x12]]
    %v82 = vstv %s81
    %v83 = vmul.f32 %v82, %v80
    %v84 = vadd.f32 %v65, %v83
    %s85 = sld [smem:[#allocation2 + $0x9]]
    %v86 = vstv %s85
    %v87 = vmul.f32 %v86, %v24
    %s88 = sld [smem:[#allocation2 + $0xa]]
    %v89 = vstv %s88
    %v90 = vmul.f32 %v89, %v26
    %v91 = vadd.f32 %v87, %v90
    %s92 = sld [smem:[#allocation2 + $0xb]]
    %v93 = vstv %s92
    %v94 = vmul.f32 %v93, %v28
    %v95 = vadd.f32 %v91, %v94
    %s96 = sld [smem:[#allocation2 + $0xf]]
    %v97 = vstv %s96
    %v98 = vadd.f32 %v95, %v97
    %v99 = vmax.f32 %v98, 0.0
    %s100 = sld [smem:[#allocation2 + $0x13]]
    %v101 = vstv %s100
    %v102 = vmul.f32 %v101, %v99
    %v103 = vadd.f32 %v84, %v102
    %s104 = sld [smem:[#allocation2 + $0x14]]
    %v105 = vstv %s104
    %v106 = vadd.f32 %v103, %v105
    %v107 = vmul.f32 %v106, 0.5
    %v108 = vtanh.pop %v107
    %v109 = vmul.f32 %v108, 0.5
    %v110 = vadd.f32 %v109, 0.5
    %111 = vst [vmem:[%s2] sm:$0xff] %v110
    // Predicated region
    $region14: #{neural_net_forward.1} parent=1 // pred_check
      _
    $region15: #{neural_net_forward.1} parent=1 // pred_check_branch
      %113 = sbr.rel (0) target = $region17
    $region16: #{neural_net_forward.1} parent=1 // pred_region
      _
    $region17: #{neural_net_forward.1} parent=1 // pred_fallthru
      _
    // Predicated region
    $region18: #{neural_net_forward.1} parent=1 // pred_check
      _
    $region19: #{neural_net_forward.1} parent=1 // pred_check_branch
      %115 = sbr.rel (0) target = $region21
    $region20: #{neural_net_forward.1} parent=1 // pred_region
      _
    $region21: #{neural_net_forward.1} parent=1 // pred_fallthru
      _
    %116 = vsyncpa [#allocation3], 1

</llo_original>
